<compile_context>
chip_gen: v7x
topology: tpu7x:2x2x1
jax: 0.10.0
libtpu: 0.0.40
codegen_flags: <defaults>
</compile_context>

<pallas_src>
import functools

import jax
import jax.numpy as jnp
from jax.experimental import pallas as pl
from jax.experimental.pallas import tpu as pltpu


def _round_up(x: int, m: int) -> int:
    return ((x + m - 1) // m) * m


def _spose_matmul_kernel_accum(x_ref, w_ref, o_ref):
    """One (tm, tn) output tile of x @ W.T with K-axis accumulation.

    x_ref: (tm, tk) activation tile
    w_ref: (tn, tk) weight tile in PyTorch (out, in) layout -> contract on K
    o_ref: (tm, tn) f32 output tile, resident in VMEM across the K grid axis.
    """
    @pl.when(pl.program_id(2) == 0)
    def _():
        o_ref[...] = jnp.zeros_like(o_ref)

    o_ref[...] += jax.lax.dot_general(
        x_ref[...],
        w_ref[...],
        dimension_numbers=(((1,), (1,)), ((), ())),  # x @ W.T, no HBM transpose
        preferred_element_type=jnp.float32,
    )


def _spose_matmul_kernel_single(x_ref, w_ref, o_ref):
    """Single-K-step variant: write the tile directly (no zero-init / RMW)."""
    o_ref[...] = jax.lax.dot_general(
        x_ref[...],
        w_ref[...],
        dimension_numbers=(((1,), (1,)), ((), ())),
        preferred_element_type=jnp.float32,
    )


@functools.partial(
    jax.jit,
    static_argnames=("tm", "tn", "tk", "compute_dtype", "min_pallas_elems"),
)
def spose_forward(x, weight, *, tm=None, tn=None, tk=None,
                  compute_dtype=None, min_pallas_elems=128 * 128):
    """SPoSE forward: y = x @ weight.T  (float32 result).

    x:       (N, in_size)         float32
    weight:  (out_size, in_size)  float32 (PyTorch nn.Linear layout)
    compute_dtype: optionally jnp.bfloat16 to run the MXU natively in bf16
                   (f32 accumulation), halving HBM traffic for x and W.
    """
    n, in_size = x.shape
    out_size, in_size_w = weight.shape
    assert in_size == in_size_w, "x / weight in_size mismatch"

    # Tiny problems cannot amortize a Pallas launch + DMA setup: let XLA fuse it.
    if n * out_size < min_pallas_elems:
        return jnp.dot(x, weight.T, preferred_element_type=jnp.float32)

    xp = x if compute_dtype is None else x.astype(compute_dtype)
    wp = weight if compute_dtype is None else weight.astype(compute_dtype)

    # Sublane granularity depends on element width (f32: 8, bf16: 16, int8: 32).
    sub = {4: 8, 2: 16, 1: 32}.get(xp.dtype.itemsize, 8)

    # Tile sizes: big enough to amortize per-grid-step overhead and feed the
    # 256-wide MXU on v6e/v7x, small enough (<~9 MiB double-buffered) to fit
    # comfortably on v7x's 64 MiB VMEM.
    pn = _round_up(n, sub)
    tm = tm or min(pn, 256)
    pn = _round_up(pn, tm)

    pout = _round_up(out_size, 128)   # lane-dense output (no masked vst)
    tn = tn or min(pout, 256)
    pout = _round_up(pout, tn)

    pin = _round_up(in_size, 128)
    tk = tk or min(pin, 2048)
    pin = _round_up(pin, tk)

    if (pn, pin) != (n, in_size):
        xp = jnp.pad(xp, ((0, pn - n), (0, pin - in_size)))
    if (pout, pin) != (out_size, in_size):
        wp = jnp.pad(wp, ((0, pout - out_size), (0, pin - in_size)))

    grid = (pn // tm, pout // tn, pin // tk)
    kernel = _spose_matmul_kernel_single if grid[2] == 1 else _spose_matmul_kernel_accum

    cost = pl.CostEstimate(
        flops=2 * n * in_size * out_size,
        bytes_accessed=(n * in_size + out_size * in_size) * xp.dtype.itemsize
                       + n * out_size * 4,
        transcendentals=0,
    )

    out = pl.pallas_call(
        kernel,
        out_shape=jax.ShapeDtypeStruct((pn, pout), jnp.float32),
        grid_spec=pltpu.PrefetchScalarGridSpec(
            num_scalar_prefetch=0,
            grid=grid,
            in_specs=[
                pl.BlockSpec((tm, tk), lambda i, j, k: (i, k)),   # x tile
                pl.BlockSpec((tn, tk), lambda i, j, k: (j, k)),   # W tile (out, in)
            ],
            out_specs=pl.BlockSpec((tm, tn), lambda i, j, k: (i, j)),
        ),
        compiler_params=pltpu.CompilerParams(
            dimension_semantics=("parallel", "parallel", "arbitrary"),
            vmem_limit_bytes=32 * 1024 * 1024,
        ),
        cost_estimate=cost,
    )(xp, wp)

    if (pn, pout) != (n, out_size):
        out = out[:n, :out_size]
    return out


def init_spose_weight(key, in_size, out_size):
    """Mirrors SPoSE._initialize_weights: W ~ N(0.1, 0.01)."""
    mean, std = 0.1, 0.01
    return mean + std * jax.random.normal(key, (out_size, in_size), jnp.float32)


if __name__ == "__main__":
    key = jax.random.PRNGKey(0)
    k1, k2, k3, k4 = jax.random.split(key, 4)

    # --- Case 1: SPoSE-like small/awkward dims (embedding dim 100) ->
    #     padded lanes + single-K-step kernel path (no accumulation RMW).
    n1, i1, o1 = 256, 96, 100
    w1 = init_spose_weight(k1, i1, o1)
    x1 = jax.random.normal(k2, (n1, i1), jnp.float32)
    y1 = jax.block_until_ready(spose_forward(x1, w1))
    assert y1.shape == (n1, o1)
    assert jnp.allclose(y1, x1 @ w1.T, atol=2e-2, rtol=2e-2), "case 1 mismatch"

    # --- Case 2: tile-aligned dims with small explicit tiles -> multi-step
    #     K grid, exercising accumulation into the resident output block.
    n2, i2, o2 = 256, 512, 256
    w2 = init_spose_weight(k3, i2, o2)
    x2 = jax.random.normal(k4, (n2, i2), jnp.float32)
    y2 = jax.block_until_ready(spose_forward(x2, w2, tm=128, tn=128, tk=128))
    assert jnp.allclose(y2, x2 @ w2.T, atol=2e-2, rtol=2e-2), "case 2 mismatch"

    # --- Case 3: bf16 compute (f32 accumulation) for native-MXU throughput.
    y3 = jax.block_until_ready(spose_forward(x2, w2, compute_dtype=jnp.bfloat16))
    assert jnp.allclose(y3, x2 @ w2.T, atol=1e-1, rtol=5e-2), "bf16 case mismatch"

    print("KERNEL_OK")
</pallas_src>

<mosaic_0001>
module attributes {stable_mosaic.version = 11 : i64} {
  func.func @_spose_matmul_kernel_single(%arg0: i32, %arg1: i32, %arg2: i32, %arg3: memref<256x128xf32, #tpu.memory_space<vmem>>, %arg4: memref<128x128xf32, #tpu.memory_space<vmem>>, %arg5: memref<256x128xf32, #tpu.memory_space<vmem>>) attributes {dimension_semantics = [#tpu.dimension_semantics<parallel>, #tpu.dimension_semantics<parallel>, #tpu.dimension_semantics<arbitrary>], iteration_bounds = array<i64: 1, 1, 1>, scalar_prefetch = 0 : i64, scratch_operands = 0 : i64, tpu.core_type = #tpu.core_type<tc>, window_params = [{transform_indices = @transform_0, window_bounds = array<i64: 256, 128>}, {transform_indices = @transform_1, window_bounds = array<i64: 128, 128>}, {transform_indices = @transform_2, window_bounds = array<i64: 256, 128>}]} {
    %c0 = arith.constant 0 : index
    %c0_0 = arith.constant 0 : index
    %0 = vector.load %arg3[%c0, %c0_0] : memref<256x128xf32, #tpu.memory_space<vmem>>, vector<256x128xf32>
    %c0_1 = arith.constant 0 : index
    %c0_2 = arith.constant 0 : index
    %1 = vector.load %arg4[%c0_1, %c0_2] : memref<128x128xf32, #tpu.memory_space<vmem>>, vector<128x128xf32>
    %cst = arith.constant dense<0.000000e+00> : vector<256x128xf32>
    %2 = tpu.matmul %0, %1, %cst {dimension_numbers = #tpu.dot_dimension_numbers<[1], [1], [0], [0], [0, 0, 1, 0], [], []>} : vector<256x128xf32>, vector<128x128xf32>, vector<256x128xf32> -> vector<256x128xf32>
    %c0_3 = arith.constant 0 : index
    %c0_4 = arith.constant 0 : index
    %3 = vector.load %arg5[%c0_3, %c0_4] : memref<256x128xf32, #tpu.memory_space<vmem>>, vector<256x128xf32>
    tpu.vector_store %arg5[%c0_3, %c0_4], %2 {strides = array<i32>} : memref<256x128xf32, #tpu.memory_space<vmem>>, vector<256x128xf32>,
    return
  }
  func.func @transform_0(%arg0: i32, %arg1: i32, %arg2: i32) -> (i32, i32) {
    %c0_i32 = arith.constant 0 : i32
    return %arg0, %arg2 : i32, i32
  }
  func.func @transform_1(%arg0: i32, %arg1: i32, %arg2: i32) -> (i32, i32) {
    %c0_i32 = arith.constant 0 : i32
    return %arg1, %arg2 : i32, i32
  }
  func.func @transform_2(%arg0: i32, %arg1: i32, %arg2: i32) -> (i32, i32) {
    %c0_i32 = arith.constant 0 : i32
    return %arg0, %arg1 : i32, i32
  }
}

</mosaic_0001>

<llo_original>
// kernel: spose_forward.1
$region0: #{spose_forward.1}
  #allocation0 [shape = 'u32[]', space=smem, size = 0x4, offset = 0x4, fixed_abs, tag = 'smem constant byte address 0x4 - core index']
  #allocation1 [shape = 'u32[144,128]{1,0:T(1,128)}', space=vmem, size = 0x12000, scoped, tag = 'internal scratch']
  %s0 = inlined_call_operand.vmem [shape: f32[256,128], index: 0, kind: input, shape index: {}]
  %s1 = inlined_call_operand.vmem [shape: f32[128,128], index: 1, kind: input, shape index: {}]
  %s2 = inlined_call_operand.vmem [shape: f32[256,128], index: 2, kind: output, shape index: {}]
  %s3 = sld [smem:[#allocation0]]
  $region18: #{spose_forward.1} parent=0
    _
  %s5 = ssub.s32 1, %s3
  %s6 = scalar_select 0, %s5, %s3
  // Predicated region
  $region2: #{spose_forward.1} parent=0 // pred_check
    _
  $region3: #{spose_forward.1} parent=0 // pred_check_branch
    %8 = sbr.rel (0) target = $region5
  $region4: #{spose_forward.1} parent=0 // pred_region
    _
  $region5: #{spose_forward.1} parent=0 // pred_fallthru
    _
  // Predicated region
  $region6: #{spose_forward.1} parent=0 // pred_check
    _
  $region7: #{spose_forward.1} parent=0 // pred_check_branch
    %10 = sbr.rel (0) target = $region9
  $region8: #{spose_forward.1} parent=0 // pred_region
    _
  $region9: #{spose_forward.1} parent=0 // pred_fallthru
    _
  %v11 = vld [vmem:[%s0] sm:$0xff]
  %v12 = vld [vmem:[%s0 + $0x8] sm:$0xff]
  %v13 = vld [vmem:[%s0 + $0x10] sm:$0xff]
  %v14 = vld [vmem:[%s0 + $0x18] sm:$0xff]
  %v15 = vld [vmem:[%s0 + $0x20] sm:$0xff]
  %v16 = vld [vmem:[%s0 + $0x28] sm:$0xff]
  %v17 = vld [vmem:[%s0 + $0x30] sm:$0xff]
  %v18 = vld [vmem:[%s0 + $0x38] sm:$0xff]
  %v19 = vld [vmem:[%s0 + $0x40] sm:$0xff]
  %v20 = vld [vmem:[%s0 + $0x48] sm:$0xff]
  %v21 = vld [vmem:[%s0 + $0x50] sm:$0xff]
  %v22 = vld [vmem:[%s0 + $0x58] sm:$0xff]
  %v23 = vld [vmem:[%s0 + $0x60] sm:$0xff]
  %v24 = vld [vmem:[%s0 + $0x68] sm:$0xff]
  %v25 = vld [vmem:[%s0 + $0x70] sm:$0xff]
  %v26 = vld [vmem:[%s0 + $0x78] sm:$0xff]
  %v27 = vld [vmem:[%s0 + $0x80] sm:$0xff]
  %v28 = vld [vmem:[%s0 + $0x88] sm:$0xff]
  %v29 = vld [vmem:[%s0 + $0x90] sm:$0xff]
  %v30 = vld [vmem:[%s0 + $0x98] sm:$0xff]
  %v31 = vld [vmem:[%s0 + $0xa0] sm:$0xff]
  %v32 = vld [vmem:[%s0 + $0xa8] sm:$0xff]
  %v33 = vld [vmem:[%s0 + $0xb0] sm:$0xff]
  %v34 = vld [vmem:[%s0 + $0xb8] sm:$0xff]
  %v35 = vld [vmem:[%s0 + $0xc0] sm:$0xff]
  %v36 = vld [vmem:[%s0 + $0xc8] sm:$0xff]
  %v37 = vld [vmem:[%s0 + $0xd0] sm:$0xff]
  %v38 = vld [vmem:[%s0 + $0xd8] sm:$0xff]
  %v39 = vld [vmem:[%s0 + $0xe0] sm:$0xff]
  %v40 = vld [vmem:[%s0 + $0xe8] sm:$0xff]
  %v41 = vld [vmem:[%s0 + $0xf0] sm:$0xff]
  %v42 = vld [vmem:[%s0 + $0xf8] sm:$0xff]
  %v43 = vld [vmem:[%s1] sm:$0xff]
  %v44 = vld [vmem:[%s1 + $0x8] sm:$0xff]
  %v45 = vld [vmem:[%s1 + $0x10] sm:$0xff]
  %v46 = vld [vmem:[%s1 + $0x18] sm:$0xff]
  %v47 = vld [vmem:[%s1 + $0x20] sm:$0xff]
  %v48 = vld [vmem:[%s1 + $0x28] sm:$0xff]
  %v49 = vld [vmem:[%s1 + $0x30] sm:$0xff]
  %v50 = vld [vmem:[%s1 + $0x38] sm:$0xff]
  %v51 = vld [vmem:[%s1 + $0x40] sm:$0xff]
  %v52 = vld [vmem:[%s1 + $0x48] sm:$0xff]
  %v53 = vld [vmem:[%s1 + $0x50] sm:$0xff]
  %v54 = vld [vmem:[%s1 + $0x58] sm:$0xff]
  %v55 = vld [vmem:[%s1 + $0x60] sm:$0xff]
  %v56 = vld [vmem:[%s1 + $0x68] sm:$0xff]
  %v57 = vld [vmem:[%s1 + $0x70] sm:$0xff]
  %v58 = vld [vmem:[%s1 + $0x78] sm:$0xff]
  %59 = vmatprep.subr.mxu0 0.0
  %60 = vmatpush1.xpose.msra.mxu0 %v43
  %61 = vmatprep.subr.mxu0 0.0
  %62 = vmatpush1.xpose.msra.mxu0 %v44
  %63 = vmatprep.subr.mxu0 0.0
  %64 = vmatpush1.xpose.msra.mxu0 %v45
  %65 = vmatprep.subr.mxu0 0.0
  %66 = vmatpush1.xpose.msra.mxu0 %v46
  %67 = vmatprep.subr.mxu0 0.0
  %68 = vmatpush1.xpose.msra.mxu0 %v47
  %69 = vmatprep.subr.mxu0 0.0
  %70 = vmatpush1.xpose.msra.mxu0 %v48
  %71 = vmatprep.subr.mxu0 0.0
  %72 = vmatpush1.xpose.msra.mxu0 %v49
  %73 = vmatprep.subr.mxu0 0.0
  %74 = vmatpush1.xpose.msra.mxu0 %v50
  %75 = vmatprep.subr.mxu0 0.0
  %76 = vmatpush1.xpose.msra.mxu0 %v51
  %77 = vmatprep.subr.mxu0 0.0
  %78 = vmatpush1.xpose.msra.mxu0 %v52
  %79 = vmatprep.subr.mxu0 0.0
  %80 = vmatpush1.xpose.msra.mxu0 %v53
  %81 = vmatprep.subr.mxu0 0.0
  %82 = vmatpush1.xpose.msra.mxu0 %v54
  %83 = vmatprep.subr.mxu0 0.0
  %84 = vmatpush1.xpose.msra.mxu0 %v55
  %85 = vmatprep.subr.mxu0 0.0
  %86 = vmatpush1.xpose.msra.mxu0 %v56
  %87 = vmatprep.subr.mxu0 0.0
  %88 = vmatpush1.xpose.msra.mxu0 %v57
  %89 = vmatprep.subr.mxu0 0.0
  %90 = vmatpush1.xpose.msra.mxu0 %v58
  %91 = vmatprep.subr.mxu0 0.0
  %92 = vmatpush1.xpose.msra.mxu0 0.0
  %93 = vmatprep.subr.mxu0 0.0
  %94 = vmatpush1.xpose.msra.mxu0 0.0
  %95 = vmatprep.subr.mxu0 0.0
  %96 = vmatpush1.xpose.msra.mxu0 0.0
  %97 = vmatprep.subr.mxu0 0.0
  %98 = vmatpush1.xpose.msra.mxu0 0.0
  %99 = vmatprep.subr.mxu0 0.0
  %100 = vmatpush1.xpose.msra.mxu0 0.0
  %101 = vmatprep.subr.mxu0 0.0
  %102 = vmatpush1.xpose.msra.mxu0 0.0
  %103 = vmatprep.subr.mxu0 0.0
  %104 = vmatpush1.xpose.msra.mxu0 0.0
  %105 = vmatprep.subr.mxu0 0.0
  %106 = vmatpush1.xpose.msra.mxu0 0.0
  %107 = vmatprep.subr.mxu0 0.0
  %108 = vmatpush1.xpose.msra.mxu0 0.0
  %109 = vmatprep.subr.mxu0 0.0
  %110 = vmatpush1.xpose.msra.mxu0 0.0
  %111 = vmatprep.subr.mxu0 0.0
  %112 = vmatpush1.xpose.msra.mxu0 0.0
  %113 = vmatprep.subr.mxu0 0.0
  %114 = vmatpush1.xpose.msra.mxu0 0.0
  %115 = vmatprep.subr.mxu0 0.0
  %116 = vmatpush1.xpose.msra.mxu0 0.0
  %117 = vmatprep.subr.mxu0 0.0
  %118 = vmatpush1.xpose.msra.mxu0 0.0
  %119 = vmatprep.subr.mxu0 0.0
  %120 = vmatpush1.xpose.msra.mxu0 0.0
  %121 = vmatprep.subr.mxu0 0.0
  %122 = vmatpush1.xpose.msra.mxu0 0.0
  %123 = vmatprep.mubr.f32.mxu0 0.0
  %124 = vmatmul.mubr.f32.gmra.mrb[0].mxu0 %v11
  %v125 = vpop.f32.mrb[0].mxu0
  %v126 = vadd.f32 0.0, %v125
  %v127 = vpop.f32.mrb[0].mxu0
  %128 = vmatprep.mubr.f32.mxu0 0.0
  %129 = vmatmul.mubr.f32.gmra.mrb[0].mxu0 %v12
  %v130 = vpop.f32.mrb[0].mxu0
  %v131 = vadd.f32 0.0, %v130
  %v132 = vpop.f32.mrb[0].mxu0
  %133 = vmatprep.mubr.f32.mxu0 0.0
  %134 = vmatmul.mubr.f32.gmra.mrb[0].mxu0 %v13
  %v135 = vpop.f32.mrb[0].mxu0
  %v136 = vadd.f32 0.0, %v135
  %v137 = vpop.f32.mrb[0].mxu0
  %138 = vmatprep.mubr.f32.mxu0 0.0
  %139 = vmatmul.mubr.f32.gmra.mrb[0].mxu0 %v14
  %v140 = vpop.f32.mrb[0].mxu0
  %v141 = vadd.f32 0.0, %v140
  %v142 = vpop.f32.mrb[0].mxu0
  %143 = vmatprep.mubr.f32.mxu0 0.0
  %144 = vmatmul.mubr.f32.gmra.mrb[0].mxu0 %v15
  %v145 = vpop.f32.mrb[0].mxu0
  %v146 = vadd.f32 0.0, %v145
  %v147 = vpop.f32.mrb[0].mxu0
  %148 = vmatprep.mubr.f32.mxu0 0.0
  %149 = vmatmul.mubr.f32.gmra.mrb[0].mxu0 %v16
  %v150 = vpop.f32.mrb[0].mxu0
  %v151 = vadd.f32 0.0, %v150
  %v152 = vpop.f32.mrb[0].mxu0
  %153 = vmatprep.mubr.f32.mxu0 0.0
  %154 = vmatmul.mubr.f32.gmra.mrb[0].mxu0 %v17
  %v155 = vpop.f32.mrb[0].mxu0
  %v156 = vadd.f32 0.0, %v155
  %v157 = vpop.f32.mrb[0].mxu0
  %158 = vmatprep.mubr.f32.mxu0 0.0
  %159 = vmatmul.mubr.f32.gmra.mrb[0].mxu0 %v18
  %v160 = vpop.f32.mrb[0].mxu0
  %v161 = vadd.f32 0.0, %v160
  %v162 = vpop.f32.mrb[0].mxu0
  %163 = vmatprep.mubr.f32.mxu0 0.0
  %164 = vmatmul.mubr.f32.gmra.mrb[0].mxu0 %v19
  %v165 = vpop.f32.mrb[0].mxu0
  %v166 = vadd.f32 0.0, %v165
  %v167 = vpop.f32.mrb[0].mxu0
  %168 = vmatprep.mubr.f32.mxu0 0.0
  %169 = vmatmul.mubr.f32.gmra.mrb[0].mxu0 %v20
  %v170 = vpop.f32.mrb[0].mxu0
  %v171 = vadd.f32 0.0, %v170
  %v172 = vpop.f32.mrb[0].mxu0
  %173 = vmatprep.mubr.f32.mxu0 0.0
  %174 = vmatmul.mubr.f32.gmra.mrb[0].mxu0 %v21
  %v175 = vpop.f32.mrb[0].mxu0
  %v176 = vadd.f32 0.0, %v175
  %v177 = vpop.f32.mrb[0].mxu0
  %178 = vmatprep.mubr.f32.mxu0 0.0
  %179 = vmatmul.mubr.f32.gmra.mrb[0].mxu0 %v22
  %v180 = vpop.f32.mrb[0].mxu0
  %v181 = vadd.f32 0.0, %v180
  %v182 = vpop.f32.mrb[0].mxu0
  %183 = vmatprep.mubr.f32.mxu0 0.0
  %184 = vmatmul.mubr.f32.gmra.mrb[0].mxu0 %v23
  %v185 = vpop.f32.mrb[0].mxu0
  %v186 = vadd.f32 0.0, %v185
  %v187 = vpop.f32.mrb[0].mxu0
  %188 = vmatprep.mubr.f32.mxu0 0.0
  %189 = vmatmul.mubr.f32.gmra.mrb[0].mxu0 %v24
  %v190 = vpop.f32.mrb[0].mxu0
  %v191 = vadd.f32 0.0, %v190
  %v192 = vpop.f32.mrb[0].mxu0
  %193 = vmatprep.mubr.f32.mxu0 0.0
  %194 = vmatmul.mubr.f32.gmra.mrb[0].mxu0 %v25
  %v195 = vpop.f32.mrb[0].mxu0
  %v196 = vadd.f32 0.0, %v195
  %v197 = vpop.f32.mrb[0].mxu0
  %198 = vmatprep.mubr.f32.mxu0 0.0
  %199 = vmatmul.mubr.f32.gmra.mrb[0].mxu0 %v26
  %v200 = vpop.f32.mrb[0].mxu0
  %v201 = vadd.f32 0.0, %v200
  %v202 = vpop.f32.mrb[0].mxu0
  %203 = vmatprep.mubr.f32.mxu0 0.0
  %204 = vmatmul.mubr.f32.gmra.mrb[0].mxu0 %v27
  %v205 = vpop.f32.mrb[0].mxu0
  %v206 = vadd.f32 0.0, %v205
  %v207 = vpop.f32.mrb[0].mxu0
  %208 = vmatprep.mubr.f32.mxu0 0.0
  %209 = vmatmul.mubr.f32.gmra.mrb[0].mxu0 %v28
  %v210 = vpop.f32.mrb[0].mxu0
  %v211 = vadd.f32 0.0, %v210
  %v212 = vpop.f32.mrb[0].mxu0
  %213 = vmatprep.mubr.f32.mxu0 0.0
  %214 = vmatmul.mubr.f32.gmra.mrb[0].mxu0 %v29
  %v215 = vpop.f32.mrb[0].mxu0
  %v216 = vadd.f32 0.0, %v215
  %v217 = vpop.f32.mrb[0].mxu0
  %218 = vmatprep.mubr.f32.mxu0 0.0
  %219 = vmatmul.mubr.f32.gmra.mrb[0].mxu0 %v30
  %v220 = vpop.f32.mrb[0].mxu0
  %v221 = vadd.f32 0.0, %v220
  %v222 = vpop.f32.mrb[0].mxu0
  %223 = vmatprep.mubr.f32.mxu0 0.0
  %224 = vmatmul.mubr.f32.gmra.mrb[0].mxu0 %v31
  %v225 = vpop.f32.mrb[0].mxu0
  %v226 = vadd.f32 0.0, %v225
  %v227 = vpop.f32.mrb[0].mxu0
  %228 = vmatprep.mubr.f32.mxu0 0.0
  %229 = vmatmul.mubr.f32.gmra.mrb[0].mxu0 %v32
  %v230 = vpop.f32.mrb[0].mxu0
  %v231 = vadd.f32 0.0, %v230
  %v232 = vpop.f32.mrb[0].mxu0
  %233 = vmatprep.mubr.f32.mxu0 0.0
  %234 = vmatmul.mubr.f32.gmra.mrb[0].mxu0 %v33
  %v235 = vpop.f32.mrb[0].mxu0
  %v236 = vadd.f32 0.0, %v235
  %v237 = vpop.f32.mrb[0].mxu0
  %238 = vmatprep.mubr.f32.mxu0 0.0
  %239 = vmatmul.mubr.f32.gmra.mrb[0].mxu0 %v34
  %v240 = vpop.f32.mrb[0].mxu0
  %v241 = vadd.f32 0.0, %v240
  %v242 = vpop.f32.mrb[0].mxu0
  %243 = vmatprep.mubr.f32.mxu0 0.0
  %244 = vmatmul.mubr.f32.gmra.mrb[0].mxu0 %v35
  %v245 = vpop.f32.mrb[0].mxu0
  %v246 = vadd.f32 0.0, %v245
  %v247 = vpop.f32.mrb[0].mxu0
  %248 = vmatprep.mubr.f32.mxu0 0.0
  %249 = vmatmul.mubr.f32.gmra.mrb[0].mxu0 %v36
  %v250 = vpop.f32.mrb[0].mxu0
  %v251 = vadd.f32 0.0, %v250
  %v252 = vpop.f32.mrb[0].mxu0
  %253 = vmatprep.mubr.f32.mxu0 0.0
  %254 = vmatmul.mubr.f32.gmra.mrb[0].mxu0 %v37
  %v255 = vpop.f32.mrb[0].mxu0
  %v256 = vadd.f32 0.0, %v255
  %v257 = vpop.f32.mrb[0].mxu0
  %258 = vmatprep.mubr.f32.mxu0 0.0
  %259 = vmatmul.mubr.f32.gmra.mrb[0].mxu0 %v38
  %v260 = vpop.f32.mrb[0].mxu0
  %v261 = vadd.f32 0.0, %v260
  %v262 = vpop.f32.mrb[0].mxu0
  %263 = vmatprep.mubr.f32.mxu0 0.0
  %264 = vmatmul.mubr.f32.gmra.mrb[0].mxu0 %v39
  %v265 = vpop.f32.mrb[0].mxu0
  %v266 = vadd.f32 0.0, %v265
  %v267 = vpop.f32.mrb[0].mxu0
  %268 = vmatprep.mubr.f32.mxu0 0.0
  %269 = vmatmul.mubr.f32.gmra.mrb[0].mxu0 %v40
  %v270 = vpop.f32.mrb[0].mxu0
  %v271 = vadd.f32 0.0, %v270
  %v272 = vpop.f32.mrb[0].mxu0
  %273 = vmatprep.mubr.f32.mxu0 0.0
  %274 = vmatmul.mubr.f32.gmra.mrb[0].mxu0 %v41
  %v275 = vpop.f32.mrb[0].mxu0
  %v276 = vadd.f32 0.0, %v275
  %v277 = vpop.f32.mrb[0].mxu0
  %278 = vmatprep.mubr.f32.mxu0 0.0
  %279 = vmatmul.mubr.f32.gmra.mrb[0].mxu0 %v42
  %v280 = vpop.f32.mrb[0].mxu0
  %v281 = vadd.f32 0.0, %v280
  %v282 = vpop.f32.mrb[0].mxu0
  %283 = vdwg.mxu0
  %284 = vst [vmem:[%s2] sm:$0xff] %v126
  %285 = vst [vmem:[%s2 + $0x8] sm:$0xff] %v131
  %286 = vst [vmem:[%s2 + $0x10] sm:$0xff] %v136
  %287 = vst [vmem:[%s2 + $0x18] sm:$0xff] %v141
  %288 = vst [vmem:[%s2 + $0x20] sm:$0xff] %v146
  %289 = vst [vmem:[%s2 + $0x28] sm:$0xff] %v151
  %290 = vst [vmem:[%s2 + $0x30] sm:$0xff] %v156
  %291 = vst [vmem:[%s2 + $0x38] sm:$0xff] %v161
  %292 = vst [vmem:[%s2 + $0x40] sm:$0xff] %v166
  %293 = vst [vmem:[%s2 + $0x48] sm:$0xff] %v171
  %294 = vst [vmem:[%s2 + $0x50] sm:$0xff] %v176
  %295 = vst [vmem:[%s2 + $0x58] sm:$0xff] %v181
  %296 = vst [vmem:[%s2 + $0x60] sm:$0xff] %v186
  %297 = vst [vmem:[%s2 + $0x68] sm:$0xff] %v191
  %298 = vst [vmem:[%s2 + $0x70] sm:$0xff] %v196
  %299 = vst [vmem:[%s2 + $0x78] sm:$0xff] %v201
  %300 = vst [vmem:[%s2 + $0x80] sm:$0xff] %v206
  %301 = vst [vmem:[%s2 + $0x88] sm:$0xff] %v211
  %302 = vst [vmem:[%s2 + $0x90] sm:$0xff] %v216
  %303 = vst [vmem:[%s2 + $0x98] sm:$0xff] %v221
  %304 = vst [vmem:[%s2 + $0xa0] sm:$0xff] %v226
  %305 = vst [vmem:[%s2 + $0xa8] sm:$0xff] %v231
  %306 = vst [vmem:[%s2 + $0xb0] sm:$0xff] %v236
  %307 = vst [vmem:[%s2 + $0xb8] sm:$0xff] %v241
  %308 = vst [vmem:[%s2 + $0xc0] sm:$0xff] %v246
  %309 = vst [vmem:[%s2 + $0xc8] sm:$0xff] %v251
  %310 = vst [vmem:[%s2 + $0xd0] sm:$0xff] %v256
  %311 = vst [vmem:[%s2 + $0xd8] sm:$0xff] %v261
  %312 = vst [vmem:[%s2 + $0xe0] sm:$0xff] %v266
  %313 = vst [vmem:[%s2 + $0xe8] sm:$0xff] %v271
  %314 = vst [vmem:[%s2 + $0xf0] sm:$0xff] %v276
  %315 = vst [vmem:[%s2 + $0xf8] sm:$0xff] %v281
  // Predicated region
  $region10: #{spose_forward.1} parent=0 // pred_check
    _
  $region11: #{spose_forward.1} parent=0 // pred_check_branch
    %317 = sbr.rel (0) target = $region13
  $region12: #{spose_forward.1} parent=0 // pred_region
    _
  $region13: #{spose_forward.1} parent=0 // pred_fallthru
    _
  // Predicated region
  $region14: #{spose_forward.1} parent=0 // pred_check
    _
  $region15: #{spose_forward.1} parent=0 // pred_check_branch
    %319 = sbr.rel (0) target = $region17
  $region16: #{spose_forward.1} parent=0 // pred_region
    _
  $region17: #{spose_forward.1} parent=0 // pred_fallthru
    _

</llo_original>
